<compile_context>
chip_gen: v7x
topology: tpu7x:2x2x1
jax: 0.10.0
libtpu: 0.0.40
codegen_flags: <defaults>
</compile_context>

<pallas_src>
import numpy as np
import jax
import jax.numpy as jnp
from jax.experimental import pallas as pl
from jax.experimental.pallas import tpu as pltpu


# ----------------------------------------------------------------------------
# PIL resample-weight matrices (host-side glue, float64 numpy)
# ----------------------------------------------------------------------------
def _bicubic_filter(x):
    # PIL's cubic filter, a = -0.5, support = 2.0
    a = -0.5
    x = abs(float(x))
    if x < 1.0:
        return ((a + 2.0) * x - (a + 3.0)) * x * x + 1.0
    if x < 2.0:
        return (((x - 5.0) * x + 8.0) * x - 4.0) * a
    return 0.0


def _box_filter(x):
    # PIL's box filter, support = 0.5
    x = float(x)
    return 1.0 if (-0.5 <= x < 0.5) else 0.0


def _resize_matrix(in_size, out_size, filt, support):
    """Row-stochastic (out_size, in_size) float64 matrix matching PIL precompute_coeffs."""
    scale = in_size / out_size
    filterscale = max(scale, 1.0)
    sup = support * filterscale
    ss = 1.0 / filterscale
    mat = np.zeros((out_size, in_size), dtype=np.float64)
    for xx in range(out_size):
        center = (xx + 0.5) * scale
        xmin = max(int(center - sup + 0.5), 0)
        xmax = min(int(center + sup + 0.5), in_size)
        ws = [filt((x - center + 0.5) * ss) for x in range(xmin, xmax)]
        total = sum(ws)
        if total != 0.0:
            ws = [w / total for w in ws]
        mat[xx, xmin:xmax] = ws
    return mat


def _compose_weights(H, W, image_size):
    """Compose all BOX halvings + BICUBIC + center crop into (S,H) / (S,W) float64 matrices."""
    h, w = H, W
    wy_total = np.eye(H, dtype=np.float64)
    wx_total = np.eye(W, dtype=np.float64)
    while min(w, h) >= 2 * image_size:
        wy_total = _resize_matrix(h, h // 2, _box_filter, 0.5) @ wy_total
        wx_total = _resize_matrix(w, w // 2, _box_filter, 0.5) @ wx_total
        h, w = h // 2, w // 2
    scale = image_size / min(w, h)
    new_w, new_h = round(w * scale), round(h * scale)  # Python round(), as in the module
    wy_total = _resize_matrix(h, new_h, _bicubic_filter, 2.0) @ wy_total  # (new_h, H)
    wx_total = _resize_matrix(w, new_w, _bicubic_filter, 2.0) @ wx_total  # (new_w, W)
    crop_y = (new_h - image_size) // 2
    crop_x = (new_w - image_size) // 2
    return (wy_total[crop_y:crop_y + image_size],   # (S, H)
            wx_total[crop_x:crop_x + image_size])   # (S, W)


def _round_up(n, m):
    return ((n + m - 1) // m) * m


# ----------------------------------------------------------------------------
# Single fused Pallas kernel on the native HWC layout:
#   out_flat = Wy_total @ x_flat @ Wxc_total          (padded, lane-dense)
# where x_flat = img.reshape(H, W*C) and Wxc is the channel-block-diagonal column weight.
# ----------------------------------------------------------------------------
def _fused_resample_hwc(x_flat, wy_p, wxc_p):
    """x_flat: (H, W*C) f32; wy_p: (Sph, H) f32; wxc_p: (W*C, Spw) f32 -> (Sph, Spw) f32."""
    H, WC = x_flat.shape
    Sph = wy_p.shape[0]
    Spw = wxc_p.shape[1]

    # Contraction-order choice by MAC count, decided statically on the host.
    rows_first = (Sph * H * WC + Sph * WC * Spw) <= (H * WC * Spw + Sph * H * Spw)

    def kernel(wy_ref, x_ref, wxc_ref, o_ref):
        if rows_first:
            t = jnp.dot(wy_ref[...], x_ref[...], preferred_element_type=jnp.float32)   # (Sph, WC)
            o_ref[...] = jnp.dot(t, wxc_ref[...], preferred_element_type=jnp.float32)  # (Sph, Spw)
        else:
            t = jnp.dot(x_ref[...], wxc_ref[...], preferred_element_type=jnp.float32)  # (H, Spw)
            o_ref[...] = jnp.dot(wy_ref[...], t, preferred_element_type=jnp.float32)   # (Sph, Spw)

    # Explicit VMEM budget only when the default scoped limit would not suffice
    # (BlockSpec double-buffers each operand).
    approx_bytes = 4 * 2 * (Sph * H + H * WC + WC * Spw + Sph * Spw) + (2 << 20)
    cp_kwargs = dict(dimension_semantics=("arbitrary",))
    if approx_bytes > (16 << 20):
        cp_kwargs["vmem_limit_bytes"] = int(min(approx_bytes, 100 << 20))

    return pl.pallas_call(
        kernel,
        out_shape=jax.ShapeDtypeStruct((Sph, Spw), jnp.float32),
        grid=(1,),
        in_specs=[
            pl.BlockSpec((Sph, H), lambda i: (0, 0)),
            pl.BlockSpec((H, WC), lambda i: (0, 0)),
            pl.BlockSpec((WC, Spw), lambda i: (0, 0)),
        ],
        out_specs=pl.BlockSpec((Sph, Spw), lambda i: (0, 0)),
        compiler_params=pltpu.CompilerParams(**cp_kwargs),
    )(wy_p, x_flat, wxc_p)


# ----------------------------------------------------------------------------
# Full forward pass (shapes are static -> weight composition happens on the host)
# ----------------------------------------------------------------------------
def short_side_resize_center_crop(img_hwc, image_size):
    H, W, C = img_hwc.shape
    if H == image_size and W == image_size:
        return jnp.asarray(img_hwc, jnp.float32)

    S = image_size
    wy, wx = _compose_weights(H, W, S)            # (S, H), (S, W) float64, crop folded in

    # Pad for lane-dense (unmasked) stores: sublane dim to x8, lane dim to x128.
    Sph = _round_up(S, 8)
    Spw = _round_up(S * C, 128)

    wy_p = np.zeros((Sph, H), dtype=np.float32)
    wy_p[:S] = wy.astype(np.float32)

    # Block-diagonal channel expansion of the column weights:
    #   wxc_p[w*C + c, p*C + c] = wx[p, w]   (zeros elsewhere, incl. lane padding)
    wxc_p = np.zeros((W * C, Spw), dtype=np.float32)
    wxT = wx.T.astype(np.float32)                 # (W, S)
    for c in range(C):
        wxc_p[c::C, c:S * C:C] = wxT

    # Native HWC layout: (H, W, C) viewed as (H, W*C) — a free, contiguous reshape (no transpose).
    x_flat = jnp.reshape(jnp.asarray(img_hwc, jnp.float32), (H, W * C))
    out_p = _fused_resample_hwc(x_flat, jnp.asarray(wy_p), jnp.asarray(wxc_p))   # (Sph, Spw)
    return jnp.reshape(out_p[:S, :S * C], (S, S, C))


# ----------------------------------------------------------------------------
# Pure-numpy reference: applies the stages SEQUENTIALLY (like PIL) in float64
# ----------------------------------------------------------------------------
def _reference(img_hwc, image_size):
    H, W, C = img_hwc.shape
    if H == image_size and W == image_size:
        return np.asarray(img_hwc, np.float32)
    x = np.asarray(img_hwc, np.float64).transpose(2, 0, 1)
    h, w = H, W
    while min(w, h) >= 2 * image_size:
        wy = _resize_matrix(h, h // 2, _box_filter, 0.5)
        wx = _resize_matrix(w, w // 2, _box_filter, 0.5)
        x = np.einsum("oh,chw,pw->cop", wy, x, wx)
        h, w = h // 2, w // 2
    scale = image_size / min(w, h)
    new_w, new_h = round(w * scale), round(h * scale)
    wy = _resize_matrix(h, new_h, _bicubic_filter, 2.0)
    wx = _resize_matrix(w, new_w, _bicubic_filter, 2.0)
    x = np.einsum("oh,chw,pw->cop", wy, x, wx)
    arr = x.transpose(1, 2, 0)
    cy = (new_h - image_size) // 2
    cx = (new_w - image_size) // 2
    return arr[cy:cy + image_size, cx:cx + image_size].astype(np.float32)


if __name__ == "__main__":
    key = jax.random.PRNGKey(0)
    H, W, C = 64, 96, 3          # PIL size = (W=96, H=64): two BOX halvings, then BICUBIC + crop
    image_size = 12
    img = jax.random.uniform(key, (H, W, C), dtype=jnp.float32)

    out = short_side_resize_center_crop(img, image_size)
    out = jax.block_until_ready(out)

    ref = _reference(np.asarray(img), image_size)
    assert out.shape == (image_size, image_size, C), out.shape
    err = float(np.max(np.abs(np.asarray(out) - ref)))
    assert np.allclose(np.asarray(out), ref, rtol=1e-4, atol=1e-4), err
    print("KERNEL_OK")
</pallas_src>

<mosaic_0001>
module attributes {stable_mosaic.version = 11 : i64} {
  func.func @kernel(%arg0: i32, %arg1: memref<16x64xf32, #tpu.memory_space<vmem>>, %arg2: memref<64x288xf32, #tpu.memory_space<vmem>>, %arg3: memref<288x128xf32, #tpu.memory_space<vmem>>, %arg4: memref<16x128xf32, #tpu.memory_space<vmem>>) attributes {dimension_semantics = [#tpu.dimension_semantics<arbitrary>], iteration_bounds = array<i64: 1>, scalar_prefetch = 0 : i64, scratch_operands = 0 : i64, tpu.core_type = #tpu.core_type<tc>, window_params = [{pipeline_mode = #tpu.pipeline_mode<synchronous>, transform_indices = @transform_0, window_bounds = array<i64: 16, 64>}, {pipeline_mode = #tpu.pipeline_mode<synchronous>, transform_indices = @transform_1, window_bounds = array<i64: 64, 288>}, {pipeline_mode = #tpu.pipeline_mode<synchronous>, transform_indices = @transform_2, window_bounds = array<i64: 288, 128>}, {pipeline_mode = #tpu.pipeline_mode<synchronous>, transform_indices = @transform_3, window_bounds = array<i64: 16, 128>}]} {
    %c0 = arith.constant 0 : index
    %c0_0 = arith.constant 0 : index
    %0 = vector.load %arg1[%c0, %c0_0] : memref<16x64xf32, #tpu.memory_space<vmem>>, vector<16x64xf32>
    %c0_1 = arith.constant 0 : index
    %c0_2 = arith.constant 0 : index
    %1 = vector.load %arg2[%c0_1, %c0_2] : memref<64x288xf32, #tpu.memory_space<vmem>>, vector<64x288xf32>
    %cst = arith.constant dense<0.000000e+00> : vector<16x288xf32>
    %2 = tpu.matmul %0, %1, %cst {dimension_numbers = #tpu.dot_dimension_numbers<[1], [0], [0], [1], [0, 0, 1, 1], [], []>} : vector<16x64xf32>, vector<64x288xf32>, vector<16x288xf32> -> vector<16x288xf32>
    %c0_3 = arith.constant 0 : index
    %c0_4 = arith.constant 0 : index
    %3 = vector.load %arg3[%c0_3, %c0_4] : memref<288x128xf32, #tpu.memory_space<vmem>>, vector<288x128xf32>
    %cst_5 = arith.constant dense<0.000000e+00> : vector<16x128xf32>
    %4 = tpu.matmul %2, %3, %cst_5 {dimension_numbers = #tpu.dot_dimension_numbers<[1], [0], [0], [1], [0, 0, 1, 1], [], []>} : vector<16x288xf32>, vector<288x128xf32>, vector<16x128xf32> -> vector<16x128xf32>
    %c0_6 = arith.constant 0 : index
    %c0_7 = arith.constant 0 : index
    %5 = vector.load %arg4[%c0_6, %c0_7] : memref<16x128xf32, #tpu.memory_space<vmem>>, vector<16x128xf32>
    tpu.vector_store %arg4[%c0_6, %c0_7], %4 {strides = array<i32>} : memref<16x128xf32, #tpu.memory_space<vmem>>, vector<16x128xf32>,
    return
  }
  func.func @transform_0(%arg0: i32) -> (i32, i32) {
    %c0_i32 = arith.constant 0 : i32
    %c0_i32_0 = arith.constant 0 : i32
    %c0_i32_1 = arith.constant 0 : i32
    return %c0_i32, %c0_i32_0 : i32, i32
  }
  func.func @transform_1(%arg0: i32) -> (i32, i32) {
    %c0_i32 = arith.constant 0 : i32
    %c0_i32_0 = arith.constant 0 : i32
    %c0_i32_1 = arith.constant 0 : i32
    return %c0_i32, %c0_i32_0 : i32, i32
  }
  func.func @transform_2(%arg0: i32) -> (i32, i32) {
    %c0_i32 = arith.constant 0 : i32
    %c0_i32_0 = arith.constant 0 : i32
    %c0_i32_1 = arith.constant 0 : i32
    return %c0_i32, %c0_i32_0 : i32, i32
  }
  func.func @transform_3(%arg0: i32) -> (i32, i32) {
    %c0_i32 = arith.constant 0 : i32
    %c0_i32_0 = arith.constant 0 : i32
    %c0_i32_1 = arith.constant 0 : i32
    return %c0_i32, %c0_i32_0 : i32, i32
  }
}

</mosaic_0001>

<llo_original>
// kernel: tpu_custom_call.1
$region0: #{tpu_custom_call.1}
  #allocation0 [shape = 'u32[]', space=smem, size = 0x4, offset = 0x4, fixed_abs, tag = 'smem constant byte address 0x4 - core index']
  #allocation1 [shape = 'u32[144,128]{1,0:T(1,128)}', space=vmem, size = 0x12000, scoped, tag = 'internal scratch']
  %s0 = inlined_call_operand.hbm [shape: f32[16,64], index: 0, kind: input, shape index: {}]
  %s1 = inlined_call_operand.hbm [shape: f32[64,288], index: 1, kind: input, shape index: {}]
  %s2 = inlined_call_operand.hbm [shape: f32[288,128], index: 2, kind: input, shape index: {}]
  %s3 = inlined_call_operand.hbm [shape: f32[16,128], index: 3, kind: output, shape index: {}]
  %s4 = sld [smem:[#allocation0]]
  $region34: #{tpu_custom_call.1} parent=0
    _
  %s6 = ssub.s32 1, %s4
  %s7 = scalar_select 0, %s6, %s4
  $region1: #{tpu_custom_call.1} parent=0
    #allocation2 [shape = 'u8[8192]{0}', space=vmem, size = 0x2000, scoped, tag = 'input window, operand 0, single buffered']
    #allocation3 [shape = 's32[1]{0}', space=sflag, size = 0x4, scoped, tag = 'scoped memory for tpu_custom_call.1']
    #allocation4 [shape = 's32[1]{0}', space=sflag, size = 0x4, scoped, tag = 'scoped memory for tpu_custom_call.1']
    #allocation5 [shape = 'u8[98304]{0}', space=vmem, size = 0x18000, scoped, tag = 'input window, operand 1, single buffered']
    #allocation6 [shape = 's32[1]{0}', space=sflag, size = 0x4, scoped, tag = 'scoped memory for tpu_custom_call.1']
    #allocation7 [shape = 'u8[147456]{0}', space=vmem, size = 0x24000, scoped, tag = 'input window, operand 2, single buffered']
    #allocation8 [shape = 'u8[8192]{0}', space=vmem, size = 0x2000, scoped, tag = 'output window, operand 0, single buffered']
    %8 = vsyncpa [#allocation3], 0
    %9 = vsyncpa [#allocation6], 0
    %10 = vsyncpa [#allocation4], 0
    // Predicated region
    $region2: #{tpu_custom_call.1} parent=1 // pred_check
      _
    $region3: #{tpu_custom_call.1} parent=1 // pred_check_branch
      %12 = sbr.rel (0) target = $region5
    $region4: #{tpu_custom_call.1} parent=1 // pred_region
      %s14 = ssub.s32 256, 256
      %15 = vsyncadd [#allocation3], %s14
      %s16 = sshll.u32 [#allocation2], 4
      %s17 = int_to_ptr.vmem [resolvable:$true] %s16
      %22 = dma.hbm_to_vmem [thread:$0]  %s0, 256, %s17, [#allocation3], 128, 128, 8
    $region5: #{tpu_custom_call.1} parent=1 // pred_fallthru
      _
    // Predicated region
    $region6: #{tpu_custom_call.1} parent=1 // pred_check
      _
    $region7: #{tpu_custom_call.1} parent=1 // pred_check_branch
      %24 = sbr.rel (0) target = $region9
    $region8: #{tpu_custom_call.1} parent=1 // pred_region
      %s26 = ssub.s32 3072, 3072
      %27 = vsyncadd [#allocation6], %s26
      %s28 = sshll.u32 [#allocation5], 4
      %s29 = int_to_ptr.vmem [resolvable:$true] %s28
      %34 = dma.hbm_to_vmem [thread:$0]  %s1, 3072, %s29, [#allocation6], 384, 384, 24
    $region9: #{tpu_custom_call.1} parent=1 // pred_fallthru
      _
    // Predicated region
    $region10: #{tpu_custom_call.1} parent=1 // pred_check
      _
    $region11: #{tpu_custom_call.1} parent=1 // pred_check_branch
      %36 = sbr.rel (0) target = $region13
    $region12: #{tpu_custom_call.1} parent=1 // pred_region
      %s38 = ssub.s32 4608, 4608
      %39 = vsyncadd [#allocation6], %s38
      %s40 = sshll.u32 [#allocation7], 4
      %s41 = int_to_ptr.vmem [resolvable:$true] %s40
      %46 = dma.hbm_to_vmem [thread:$0]  %s2, 4608, %s41, [#allocation6], 128, 128, 8
    $region13: #{tpu_custom_call.1} parent=1 // pred_fallthru
      _
    // Predicated region
    $region14: #{tpu_custom_call.1} parent=1 // pred_check
      _
    $region15: #{tpu_custom_call.1} parent=1 // pred_check_branch
      %48 = sbr.rel (0) target = $region17
    $region16: #{tpu_custom_call.1} parent=1 // pred_region
      %49 = dma.done [#allocation3], 256
    $region17: #{tpu_custom_call.1} parent=1 // pred_fallthru
      _
    // Predicated region
    $region18: #{tpu_custom_call.1} parent=1 // pred_check
      _
    $region19: #{tpu_custom_call.1} parent=1 // pred_check_branch
      %51 = sbr.rel (0) target = $region21
    $region20: #{tpu_custom_call.1} parent=1 // pred_region
      %52 = dma.done [#allocation6], 3072
    $region21: #{tpu_custom_call.1} parent=1 // pred_fallthru
      _
    // Predicated region
    $region22: #{tpu_custom_call.1} parent=1 // pred_check
      _
    $region23: #{tpu_custom_call.1} parent=1 // pred_check_branch
      %54 = sbr.rel (0) target = $region25
    $region24: #{tpu_custom_call.1} parent=1 // pred_region
      %55 = dma.done [#allocation6], 4608
    $region25: #{tpu_custom_call.1} parent=1 // pred_fallthru
      _
    %v56 = vld [vmem:[#allocation2] sm:$0xff]
    %v57 = vld [vmem:[#allocation2 + $0x8] sm:$0xff]
    %v58 = vld [vmem:[#allocation5] sm:$0xff]
    %v59 = vld [vmem:[#allocation5 + $0x8] sm:$0xff]
    %v60 = vld [vmem:[#allocation5 + $0x10] sm:$0xff]
    %v61 = vld [vmem:[#allocation5 + $0x18] sm:$0xff]
    %v62 = vld [vmem:[#allocation5 + $0x20] sm:$0xff]
    %v63 = vld [vmem:[#allocation5 + $0x28] sm:$0xff]
    %v64 = vld [vmem:[#allocation5 + $0x30] sm:$0xff]
    %v65 = vld [vmem:[#allocation5 + $0x38] sm:$0xff]
    %v66 = vld [vmem:[#allocation5 + $0x40] sm:$0xff]
    %v67 = vld [vmem:[#allocation5 + $0x48] sm:$0xff]
    %v68 = vld [vmem:[#allocation5 + $0x50] sm:$0xff]
    %v69 = vld [vmem:[#allocation5 + $0x58] sm:$0xff]
    %v70 = vld [vmem:[#allocation5 + $0x60] sm:$0xff]
    %v71 = vld [vmem:[#allocation5 + $0x68] sm:$0xff]
    %v72 = vld [vmem:[#allocation5 + $0x70] sm:$0xff]
    %v73 = vld [vmem:[#allocation5 + $0x78] sm:$0xff]
    %v74 = vld [vmem:[#allocation5 + $0x80] sm:$0xff]
    %v75 = vld [vmem:[#allocation5 + $0x88] sm:$0xff]
    %v76 = vld [vmem:[#allocation5 + $0x90] sm:$0xff]
    %v77 = vld [vmem:[#allocation5 + $0x98] sm:$0xff]
    %v78 = vld [vmem:[#allocation5 + $0xa0] sm:$0xff]
    %v79 = vld [vmem:[#allocation5 + $0xa8] sm:$0xff]
    %v80 = vld [vmem:[#allocation5 + $0xb0] sm:$0xff]
    %v81 = vld [vmem:[#allocation5 + $0xb8] sm:$0xff]
    %vm82 = vcmask 523264
    %v84 = vsel %vm82, %v56, 0
    %v87 = vsel %vm82, %v57, 0
    %89 = vmatprep.subr.mxu0 %v59
    %90 = vmatpush1.msra.mxu0 %v58
    %91 = vmatprep.subr.mxu0 %v62
    %92 = vmatpush1.msra.mxu0 %v61
    %93 = vmatprep.subr.mxu0 %v65
    %94 = vmatpush1.msra.mxu0 %v64
    %95 = vmatprep.subr.mxu0 %v68
    %96 = vmatpush1.msra.mxu0 %v67
    %97 = vmatprep.subr.mxu0 %v71
    %98 = vmatpush1.msra.mxu0 %v70
    %99 = vmatprep.subr.mxu0 %v74
    %100 = vmatpush1.msra.mxu0 %v73
    %101 = vmatprep.subr.mxu0 %v77
    %102 = vmatpush1.msra.mxu0 %v76
    %103 = vmatprep.subr.mxu0 %v80
    %104 = vmatpush1.msra.mxu0 %v79
    %105 = vmatprep.subr.mxu0 0.0
    %106 = vmatpush1.msra.mxu0 0.0
    %107 = vmatprep.subr.mxu0 0.0
    %108 = vmatpush1.msra.mxu0 0.0
    %109 = vmatprep.subr.mxu0 0.0
    %110 = vmatpush1.msra.mxu0 0.0
    %111 = vmatprep.subr.mxu0 0.0
    %112 = vmatpush1.msra.mxu0 0.0
    %113 = vmatprep.subr.mxu0 0.0
    %114 = vmatpush1.msra.mxu0 0.0
    %115 = vmatprep.subr.mxu0 0.0
    %116 = vmatpush1.msra.mxu0 0.0
    %117 = vmatprep.subr.mxu0 0.0
    %118 = vmatpush1.msra.mxu0 0.0
    %119 = vmatprep.subr.mxu0 0.0
    %120 = vmatpush1.msra.mxu0 0.0
    %121 = vmatprep.subr.mxu0 0.0
    %122 = vmatpush1.msra.mxu0 0.0
    %123 = vmatprep.subr.mxu0 0.0
    %124 = vmatpush1.msra.mxu0 0.0
    %125 = vmatprep.subr.mxu0 0.0
    %126 = vmatpush1.msra.mxu0 0.0
    %127 = vmatprep.subr.mxu0 0.0
    %128 = vmatpush1.msra.mxu0 0.0
    %129 = vmatprep.subr.mxu0 0.0
    %130 = vmatpush1.msra.mxu0 0.0
    %131 = vmatprep.subr.mxu0 0.0
    %132 = vmatpush1.msra.mxu0 0.0
    %133 = vmatprep.subr.mxu0 0.0
    %134 = vmatpush1.msra.mxu0 0.0
    %135 = vmatprep.subr.mxu0 0.0
    %136 = vmatpush1.msra.mxu0 0.0
    %137 = vmatprep.subr.mxu0 0.0
    %138 = vmatpush1.msra.mxu0 0.0
    %139 = vmatprep.subr.mxu0 0.0
    %140 = vmatpush1.msra.mxu0 0.0
    %141 = vmatprep.subr.mxu0 0.0
    %142 = vmatpush1.msra.mxu0 0.0
    %143 = vmatprep.subr.mxu0 0.0
    %144 = vmatpush1.msra.mxu0 0.0
    %145 = vmatprep.subr.mxu0 0.0
    %146 = vmatpush1.msra.mxu0 0.0
    %147 = vmatprep.subr.mxu0 0.0
    %148 = vmatpush1.msra.mxu0 0.0
    %149 = vmatprep.subr.mxu0 0.0
    %150 = vmatpush1.msra.mxu0 0.0
    %151 = vmatprep.subr.mxu0 0.0
    %152 = vmatpush1.msra.mxu0 0.0
    %153 = vmatprep.mubr.f32.mxu0 0.0
    %154 = vmatmul.mubr.f32.gmra.mrb[0].mxu0 %v84
    %v155 = vpop.f32.mrb[0].mxu0
    %v156 = vadd.f32 0.0, %v155
    %v157 = vpop.f32.mrb[0].mxu0
    %v158 = vadd.f32 0.0, %v157
    %159 = vmatprep.mubr.f32.mxu0 0.0
    %160 = vmatmul.mubr.f32.gmra.mrb[0].mxu0 %v87
    %v161 = vpop.f32.mrb[0].mxu0
    %v162 = vadd.f32 0.0, %v161
    %v163 = vpop.f32.mrb[0].mxu0
    %v164 = vadd.f32 0.0, %v163
    %165 = vdwg.mxu0
    %166 = vmatprep.subr.mxu0 0.0
    %167 = vmatpush1.msra.mxu0 %v60
    %168 = vmatprep.subr.mxu0 0.0
    %169 = vmatpush1.msra.mxu0 %v63
    %170 = vmatprep.subr.mxu0 0.0
    %171 = vmatpush1.msra.mxu0 %v66
    %172 = vmatprep.subr.mxu0 0.0
    %173 = vmatpush1.msra.mxu0 %v69
    %174 = vmatprep.subr.mxu0 0.0
    %175 = vmatpush1.msra.mxu0 %v72
    %176 = vmatprep.subr.mxu0 0.0
    %177 = vmatpush1.msra.mxu0 %v75
    %178 = vmatprep.subr.mxu0 0.0
    %179 = vmatpush1.msra.mxu0 %v78
    %180 = vmatprep.subr.mxu0 0.0
    %181 = vmatpush1.msra.mxu0 %v81
    %182 = vmatprep.subr.mxu0 0.0
    %183 = vmatpush1.msra.mxu0 0.0
    %184 = vmatprep.subr.mxu0 0.0
    %185 = vmatpush1.msra.mxu0 0.0
    %186 = vmatprep.subr.mxu0 0.0
    %187 = vmatpush1.msra.mxu0 0.0
    %188 = vmatprep.subr.mxu0 0.0
    %189 = vmatpush1.msra.mxu0 0.0
    %190 = vmatprep.subr.mxu0 0.0
    %191 = vmatpush1.msra.mxu0 0.0
    %192 = vmatprep.subr.mxu0 0.0
    %193 = vmatpush1.msra.mxu0 0.0
    %194 = vmatprep.subr.mxu0 0.0
    %195 = vmatpush1.msra.mxu0 0.0
    %196 = vmatprep.subr.mxu0 0.0
    %197 = vmatpush1.msra.mxu0 0.0
    %198 = vmatprep.subr.mxu0 0.0
    %199 = vmatpush1.msra.mxu0 0.0
    %200 = vmatprep.subr.mxu0 0.0
    %201 = vmatpush1.msra.mxu0 0.0
    %202 = vmatprep.subr.mxu0 0.0
    %203 = vmatpush1.msra.mxu0 0.0
    %204 = vmatprep.subr.mxu0 0.0
    %205 = vmatpush1.msra.mxu0 0.0
    %206 = vmatprep.subr.mxu0 0.0
    %207 = vmatpush1.msra.mxu0 0.0
    %208 = vmatprep.subr.mxu0 0.0
    %209 = vmatpush1.msra.mxu0 0.0
    %210 = vmatprep.subr.mxu0 0.0
    %211 = vmatpush1.msra.mxu0 0.0
    %212 = vmatprep.subr.mxu0 0.0
    %213 = vmatpush1.msra.mxu0 0.0
    %214 = vmatprep.subr.mxu0 0.0
    %215 = vmatpush1.msra.mxu0 0.0
    %216 = vmatprep.subr.mxu0 0.0
    %217 = vmatpush1.msra.mxu0 0.0
    %218 = vmatprep.subr.mxu0 0.0
    %219 = vmatpush1.msra.mxu0 0.0
    %220 = vmatprep.subr.mxu0 0.0
    %221 = vmatpush1.msra.mxu0 0.0
    %222 = vmatprep.subr.mxu0 0.0
    %223 = vmatpush1.msra.mxu0 0.0
    %224 = vmatprep.subr.mxu0 0.0
    %225 = vmatpush1.msra.mxu0 0.0
    %226 = vmatprep.subr.mxu0 0.0
    %227 = vmatpush1.msra.mxu0 0.0
    %228 = vmatprep.subr.mxu0 0.0
    %229 = vmatpush1.msra.mxu0 0.0
    %230 = vmatprep.mubr.f32.mxu0 0.0
    %231 = vmatmul.mubr.f32.gmra.mrb[0].mxu0 %v84
    %v232 = vpop.f32.mrb[0].mxu0
    %v233 = vadd.f32 0.0, %v232
    %v234 = vpop.f32.mrb[0].mxu0
    %235 = vmatprep.mubr.f32.mxu0 0.0
    %236 = vmatmul.mubr.f32.gmra.mrb[0].mxu0 %v87
    %v237 = vpop.f32.mrb[0].mxu0
    %v238 = vadd.f32 0.0, %v237
    %v239 = vpop.f32.mrb[0].mxu0
    %240 = vdwg.mxu0
    %v241 = vld [vmem:[#allocation7] sm:$0xff]
    %v242 = vld [vmem:[#allocation7 + $0x8] sm:$0xff]
    %v243 = vld [vmem:[#allocation7 + $0x10] sm:$0xff]
    %v244 = vld [vmem:[#allocation7 + $0x18] sm:$0xff]
    %v245 = vld [vmem:[#allocation7 + $0x20] sm:$0xff]
    %v246 = vld [vmem:[#allocation7 + $0x28] sm:$0xff]
    %v247 = vld [vmem:[#allocation7 + $0x30] sm:$0xff]
    %v248 = vld [vmem:[#allocation7 + $0x38] sm:$0xff]
    %v249 = vld [vmem:[#allocation7 + $0x40] sm:$0xff]
    %v250 = vld [vmem:[#allocation7 + $0x48] sm:$0xff]
    %v251 = vld [vmem:[#allocation7 + $0x50] sm:$0xff]
    %v252 = vld [vmem:[#allocation7 + $0x58] sm:$0xff]
    %v253 = vld [vmem:[#allocation7 + $0x60] sm:$0xff]
    %v254 = vld [vmem:[#allocation7 + $0x68] sm:$0xff]
    %v255 = vld [vmem:[#allocation7 + $0x70] sm:$0xff]
    %v256 = vld [vmem:[#allocation7 + $0x78] sm:$0xff]
    %v257 = vld [vmem:[#allocation7 + $0x80] sm:$0xff]
    %v258 = vld [vmem:[#allocation7 + $0x88] sm:$0xff]
    %v259 = vld [vmem:[#allocation7 + $0x90] sm:$0xff]
    %v260 = vld [vmem:[#allocation7 + $0x98] sm:$0xff]
    %v261 = vld [vmem:[#allocation7 + $0xa0] sm:$0xff]
    %v262 = vld [vmem:[#allocation7 + $0xa8] sm:$0xff]
    %v263 = vld [vmem:[#allocation7 + $0xb0] sm:$0xff]
    %v264 = vld [vmem:[#allocation7 + $0xb8] sm:$0xff]
    %v265 = vld [vmem:[#allocation7 + $0xc0] sm:$0xff]
    %v266 = vld [vmem:[#allocation7 + $0xc8] sm:$0xff]
    %v267 = vld [vmem:[#allocation7 + $0xd0] sm:$0xff]
    %v268 = vld [vmem:[#allocation7 + $0xd8] sm:$0xff]
    %v269 = vld [vmem:[#allocation7 + $0xe0] sm:$0xff]
    %v270 = vld [vmem:[#allocation7 + $0xe8] sm:$0xff]
    %v271 = vld [vmem:[#allocation7 + $0xf0] sm:$0xff]
    %v272 = vld [vmem:[#allocation7 + $0xf8] sm:$0xff]
    %v273 = vld [vmem:[#allocation7 + $0x100] sm:$0xff]
    %v274 = vld [vmem:[#allocation7 + $0x108] sm:$0xff]
    %v275 = vld [vmem:[#allocation7 + $0x110] sm:$0xff]
    %v276 = vld [vmem:[#allocation7 + $0x118] sm:$0xff]
    %vm277 = vcmask 261120
    %v279 = vsel %vm277, %v233, 0
    %v282 = vsel %vm277, %v238, 0
    %284 = vmatprep.subr.mxu0 0.0
    %285 = vmatpush1.msra.mxu0 %v241
    %286 = vmatprep.subr.mxu0 0.0
    %287 = vmatpush1.msra.mxu0 %v242
    %288 = vmatprep.subr.mxu0 0.0
    %289 = vmatpush1.msra.mxu0 %v243
    %290 = vmatprep.subr.mxu0 0.0
    %291 = vmatpush1.msra.mxu0 %v244
    %292 = vmatprep.subr.mxu0 0.0
    %293 = vmatpush1.msra.mxu0 %v245
    %294 = vmatprep.subr.mxu0 0.0
    %295 = vmatpush1.msra.mxu0 %v246
    %296 = vmatprep.subr.mxu0 0.0
    %297 = vmatpush1.msra.mxu0 %v247
    %298 = vmatprep.subr.mxu0 0.0
    %299 = vmatpush1.msra.mxu0 %v248
    %300 = vmatprep.subr.mxu0 0.0
    %301 = vmatpush1.msra.mxu0 %v249
    %302 = vmatprep.subr.mxu0 0.0
    %303 = vmatpush1.msra.mxu0 %v250
    %304 = vmatprep.subr.mxu0 0.0
    %305 = vmatpush1.msra.mxu0 %v251
    %306 = vmatprep.subr.mxu0 0.0
    %307 = vmatpush1.msra.mxu0 %v252
    %308 = vmatprep.subr.mxu0 0.0
    %309 = vmatpush1.msra.mxu0 %v253
    %310 = vmatprep.subr.mxu0 0.0
    %311 = vmatpush1.msra.mxu0 %v254
    %312 = vmatprep.subr.mxu0 0.0
    %313 = vmatpush1.msra.mxu0 %v255
    %314 = vmatprep.subr.mxu0 0.0
    %315 = vmatpush1.msra.mxu0 %v256
    %316 = vmatprep.subr.mxu0 0.0
    %317 = vmatpush1.msra.mxu0 %v257
    %318 = vmatprep.subr.mxu0 0.0
    %319 = vmatpush1.msra.mxu0 %v258
    %320 = vmatprep.subr.mxu0 0.0
    %321 = vmatpush1.msra.mxu0 %v259
    %322 = vmatprep.subr.mxu0 0.0
    %323 = vmatpush1.msra.mxu0 %v260
    %324 = vmatprep.subr.mxu0 0.0
    %325 = vmatpush1.msra.mxu0 %v261
    %326 = vmatprep.subr.mxu0 0.0
    %327 = vmatpush1.msra.mxu0 %v262
    %328 = vmatprep.subr.mxu0 0.0
    %329 = vmatpush1.msra.mxu0 %v263
    %330 = vmatprep.subr.mxu0 0.0
    %331 = vmatpush1.msra.mxu0 %v264
    %332 = vmatprep.subr.mxu0 0.0
    %333 = vmatpush1.msra.mxu0 %v265
    %334 = vmatprep.subr.mxu0 0.0
    %335 = vmatpush1.msra.mxu0 %v266
    %336 = vmatprep.subr.mxu0 0.0
    %337 = vmatpush1.msra.mxu0 %v267
    %338 = vmatprep.subr.mxu0 0.0
    %339 = vmatpush1.msra.mxu0 %v268
    %340 = vmatprep.subr.mxu0 0.0
    %341 = vmatpush1.msra.mxu0 %v269
    %342 = vmatprep.subr.mxu0 0.0
    %343 = vmatpush1.msra.mxu0 %v270
    %344 = vmatprep.subr.mxu0 0.0
    %345 = vmatpush1.msra.mxu0 %v271
    %346 = vmatprep.subr.mxu0 0.0
    %347 = vmatpush1.msra.mxu0 %v272
    %348 = vmatprep.mubr.f32.mxu0 %v158
    %349 = vmatmul.mubr.f32.gmra.mrb[0].mxu0 %v156
    %v350 = vpop.f32.mrb[0].mxu0
    %v351 = vadd.f32 0.0, %v350
    %v352 = vpop.f32.mrb[0].mxu0
    %353 = vmatprep.mubr.f32.mxu0 %v164
    %354 = vmatmul.mubr.f32.gmra.mrb[0].mxu0 %v162
    %v355 = vpop.f32.mrb[0].mxu0
    %v356 = vadd.f32 0.0, %v355
    %v357 = vpop.f32.mrb[0].mxu0
    %358 = vdwg.mxu0
    %359 = vmatprep.subr.mxu0 0.0
    %360 = vmatpush1.msra.mxu0 %v273
    %361 = vmatprep.subr.mxu0 0.0
    %362 = vmatpush1.msra.mxu0 %v274
    %363 = vmatprep.subr.mxu0 0.0
    %364 = vmatpush1.msra.mxu0 %v275
    %365 = vmatprep.subr.mxu0 0.0
    %366 = vmatpush1.msra.mxu0 %v276
    %367 = vmatprep.subr.mxu0 0.0
    %368 = vmatpush1.msra.mxu0 0.0
    %369 = vmatprep.subr.mxu0 0.0
    %370 = vmatpush1.msra.mxu0 0.0
    %371 = vmatprep.subr.mxu0 0.0
    %372 = vmatpush1.msra.mxu0 0.0
    %373 = vmatprep.subr.mxu0 0.0
    %374 = vmatpush1.msra.mxu0 0.0
    %375 = vmatprep.subr.mxu0 0.0
    %376 = vmatpush1.msra.mxu0 0.0
    %377 = vmatprep.subr.mxu0 0.0
    %378 = vmatpush1.msra.mxu0 0.0
    %379 = vmatprep.subr.mxu0 0.0
    %380 = vmatpush1.msra.mxu0 0.0
    %381 = vmatprep.subr.mxu0 0.0
    %382 = vmatpush1.msra.mxu0 0.0
    %383 = vmatprep.subr.mxu0 0.0
    %384 = vmatpush1.msra.mxu0 0.0
    %385 = vmatprep.subr.mxu0 0.0
    %386 = vmatpush1.msra.mxu0 0.0
    %387 = vmatprep.subr.mxu0 0.0
    %388 = vmatpush1.msra.mxu0 0.0
    %389 = vmatprep.subr.mxu0 0.0
    %390 = vmatpush1.msra.mxu0 0.0
    %391 = vmatprep.subr.mxu0 0.0
    %392 = vmatpush1.msra.mxu0 0.0
    %393 = vmatprep.subr.mxu0 0.0
    %394 = vmatpush1.msra.mxu0 0.0
    %395 = vmatprep.subr.mxu0 0.0
    %396 = vmatpush1.msra.mxu0 0.0
    %397 = vmatprep.subr.mxu0 0.0
    %398 = vmatpush1.msra.mxu0 0.0
    %399 = vmatprep.subr.mxu0 0.0
    %400 = vmatpush1.msra.mxu0 0.0
    %401 = vmatprep.subr.mxu0 0.0
    %402 = vmatpush1.msra.mxu0 0.0
    %403 = vmatprep.subr.mxu0 0.0
    %404 = vmatpush1.msra.mxu0 0.0
    %405 = vmatprep.subr.mxu0 0.0
    %406 = vmatpush1.msra.mxu0 0.0
    %407 = vmatprep.subr.mxu0 0.0
    %408 = vmatpush1.msra.mxu0 0.0
    %409 = vmatprep.subr.mxu0 0.0
    %410 = vmatpush1.msra.mxu0 0.0
    %411 = vmatprep.subr.mxu0 0.0
    %412 = vmatpush1.msra.mxu0 0.0
    %413 = vmatprep.subr.mxu0 0.0
    %414 = vmatpush1.msra.mxu0 0.0
    %415 = vmatprep.subr.mxu0 0.0
    %416 = vmatpush1.msra.mxu0 0.0
    %417 = vmatprep.subr.mxu0 0.0
    %418 = vmatpush1.msra.mxu0 0.0
    %419 = vmatprep.subr.mxu0 0.0
    %420 = vmatpush1.msra.mxu0 0.0
    %421 = vmatprep.subr.mxu0 0.0
    %422 = vmatpush1.msra.mxu0 0.0
    %423 = vmatprep.mubr.f32.mxu0 0.0
    %424 = vmatmul.mubr.f32.gmra.mrb[0].mxu0 %v279
    %v425 = vpop.f32.mrb[0].mxu0
    %v426 = vadd.f32 %v351, %v425
    %v427 = vpop.f32.mrb[0].mxu0
    %428 = vmatprep.mubr.f32.mxu0 0.0
    %429 = vmatmul.mubr.f32.gmra.mrb[0].mxu0 %v282
    %v430 = vpop.f32.mrb[0].mxu0
    %v431 = vadd.f32 %v356, %v430
    %v432 = vpop.f32.mrb[0].mxu0
    %433 = vdwg.mxu0
    %434 = vst [vmem:[#allocation8] sm:$0xff] %v426
    %435 = vst [vmem:[#allocation8 + $0x8] sm:$0xff] %v431
    // Predicated region
    $region26: #{tpu_custom_call.1} parent=1 // pred_check
      _
    $region27: #{tpu_custom_call.1} parent=1 // pred_check_branch
      %437 = sbr.rel (0) target = $region29
    $region28: #{tpu_custom_call.1} parent=1 // pred_region
      %s439 = ssub.s32 256, 256
      %440 = vsyncadd [#allocation4], %s439
      %s441 = sshll.u32 [#allocation8], 4
      %s442 = int_to_ptr.vmem [resolvable:$true] %s441
      %447 = dma.vmem_to_hbm [thread:$0]  %s442, 256, %s3, [#allocation4], 128, 128, 8
    $region29: #{tpu_custom_call.1} parent=1 // pred_fallthru
      _
    // Predicated region
    $region30: #{tpu_custom_call.1} parent=1 // pred_check
      _
    $region31: #{tpu_custom_call.1} parent=1 // pred_check_branch
      %449 = sbr.rel (0) target = $region33
    $region32: #{tpu_custom_call.1} parent=1 // pred_region
      %450 = dma.done [#allocation4], 256
    $region33: #{tpu_custom_call.1} parent=1 // pred_fallthru
      _
    %451 = vsyncpa [#allocation3], 1
    %452 = vsyncpa [#allocation6], 1
    %453 = vsyncpa [#allocation4], 1

</llo_original>
